<compile_context>
chip_gen: v6e
topology: v6e:2x2x1
jax: 0.10.0
libtpu: 0.0.40
codegen_flags: <defaults>
</compile_context>

<pallas_src>
import functools

import jax
import jax.numpy as jnp
from jax.experimental import pallas as pl
from jax.experimental.pallas import tpu as pltpu


def _round_up(x: int, m: int) -> int:
    return (x + m - 1) // m * m


def _cdiv(a: int, b: int) -> int:
    return (a + b - 1) // b


def _critic_kernel(s_ref, a_ref, w1s_ref, w1a_ref, b1_ref, w2_ref, b2_ref,
                   w3_ref, b3_ref, o_ref):
    """One batch tile: (state, action) (tb, Ds)/(tb, Da) -> q (tb, 1).

    All weights use constant-index BlockSpecs, so they are DMA'd once and stay
    resident in VMEM across every grid step.
    """
    # ---- Layer 1: fused [state|action] @ W1 + b1, ReLU ----------------------
    # Split-K form of the concat matmul: s @ W1[:Ds] + a @ W1[Ds:].  bf16 x
    # bf16 -> f32 is the native MXU recipe; casts here touch only (tb, 16).
    s = s_ref[...].astype(jnp.bfloat16)                   # (tb, Ds) bf16
    a = a_ref[...].astype(jnp.bfloat16)                   # (tb, Da) bf16
    acc1 = jnp.dot(s, w1s_ref[...], preferred_element_type=jnp.float32)
    acc1 = acc1 + jnp.dot(a, w1a_ref[...], preferred_element_type=jnp.float32)
    # Bias + ReLU on the f32 accumulator, then downcast to bf16 for the next
    # MXU dot (halves vreg/VMEM pressure of the (tb, H1) intermediate).
    h1 = jnp.maximum(acc1 + b1_ref[...], 0.0).astype(jnp.bfloat16)

    # ---- Layer 2: Linear + ReLU (bf16 x bf16 -> f32 on the MXU) -------------
    acc2 = jnp.dot(h1, w2_ref[...], preferred_element_type=jnp.float32)
    h2 = jnp.maximum(acc2 + b2_ref[...], 0.0)             # (tb, H2) f32

    # ---- Layer 3 (N == 1): VPU multiply + lane (XLU) reduction --------------
    # Avoids a 1-column MXU matmul that would use 1/256 of the MXU.  h2 is
    # kept f32 here for output precision (it never feeds the MXU again).
    q = jnp.sum(h2 * w3_ref[...], axis=-1, keepdims=True) + b3_ref[...]
    o_ref[...] = q.astype(o_ref.dtype)


def _choose_tile(batch: int, tile_b: int):
    """Pick the batch tile: multiple of 8, clamped for v5e VMEM headroom, and
    capped so large batches always produce >= 2 grid steps (v7x dual-TC)."""
    tile_b = max(8, min(_round_up(tile_b, 8), 2048))
    half = max(8, _round_up(_cdiv(batch, 2), 8))
    tb = min(tile_b, half)
    bp = _round_up(batch, tb)
    return tb, bp


@functools.partial(jax.jit, static_argnames=("tile_b",))
def critic_forward(state, action, prepared, tile_b=1024):
    """state: (B, Ds), action: (B, Da) -> q: (B, 1) float32."""
    w1s, w1a, b1, w2, b2, w3, b3 = prepared
    B, Ds = state.shape
    Da = action.shape[1]
    H1 = w1s.shape[1]
    H2 = w2.shape[1]

    tb, bp = _choose_tile(B, tile_b)
    if bp != B:
        state = jnp.pad(state, ((0, bp - B), (0, 0)))
        action = jnp.pad(action, ((0, bp - B), (0, 0)))
    num_tiles = bp // tb

    grid_spec = pltpu.PrefetchScalarGridSpec(
        num_scalar_prefetch=0,
        grid=(num_tiles,),
        in_specs=[
            pl.BlockSpec((tb, Ds), lambda i: (i, 0)),    # state:  tiled over batch
            pl.BlockSpec((tb, Da), lambda i: (i, 0)),    # action: tiled over batch
            pl.BlockSpec((Ds, H1), lambda i: (0, 0)),    # W1[:Ds] resident
            pl.BlockSpec((Da, H1), lambda i: (0, 0)),    # W1[Ds:] resident
            pl.BlockSpec((1, H1), lambda i: (0, 0)),     # b1
            pl.BlockSpec((H1, H2), lambda i: (0, 0)),    # W2 resident
            pl.BlockSpec((1, H2), lambda i: (0, 0)),     # b2
            pl.BlockSpec((1, H2), lambda i: (0, 0)),     # W3 as a row (VPU path)
            pl.BlockSpec((1, 1), lambda i: (0, 0)),      # b3
        ],
        out_specs=pl.BlockSpec((tb, 1), lambda i: (i, 0)),
    )

    q = pl.pallas_call(
        _critic_kernel,
        out_shape=jax.ShapeDtypeStruct((bp, 1), jnp.float32),
        grid_spec=grid_spec,
        # Batch axis is embarrassingly parallel -> shard across v7x's two TCs.
        compiler_params=pltpu.CompilerParams(
            dimension_semantics=("parallel",)),
    )(state, action, w1s, w1a, b1, w2, b2, w3, b3)

    return q[:B] if bp != B else q


def init_critic_params(key, state_size, action_size, hidden_sizes=(256, 256)):
    """Matches nn.Linear's default U(-1/sqrt(fan_in), +1/sqrt(fan_in)) init.
    Weights are stored as [in_features, out_features] (transposed for x @ W)."""
    dims = [state_size + action_size, hidden_sizes[0], hidden_sizes[1], 1]
    params = []
    for i in range(3):
        fan_in, fan_out = dims[i], dims[i + 1]
        key, kw, kb = jax.random.split(key, 3)
        bound = 1.0 / (float(fan_in) ** 0.5)
        w = jax.random.uniform(kw, (fan_in, fan_out), jnp.float32, -bound, bound)
        b = jax.random.uniform(kb, (fan_out,), jnp.float32, -bound, bound)
        params.extend([w, b])
    return tuple(params)


def prepare_critic_params(params, state_size):
    """One-time packing (hoists every per-call reshape/cast/split off the hot
    path): bf16 weights, W1 pre-split into its state/action halves along K,
    2-D f32 biases, W3 flattened to a (1, H2) row for the VPU head."""
    w1, b1, w2, b2, w3, b3 = params
    return (
        w1[:state_size].astype(jnp.bfloat16),     # (Ds, H1)
        w1[state_size:].astype(jnp.bfloat16),     # (Da, H1)
        b1.reshape(1, -1).astype(jnp.float32),    # (1, H1)
        w2.astype(jnp.bfloat16),                  # (H1, H2)
        b2.reshape(1, -1).astype(jnp.float32),    # (1, H2)
        w3.reshape(1, -1).astype(jnp.float32),    # (1, H2)  (tiny; kept f32)
        b3.reshape(1, 1).astype(jnp.float32),     # (1, 1)
    )


def critic_reference(state, action, prepared):
    """Pure-JAX reference with the SAME numerics as the kernel (bf16 weights,
    bf16 activations into each matmul, f32 accumulation)."""
    w1s, w1a, b1, w2, b2, w3, b3 = prepared
    s = state.astype(jnp.bfloat16)
    a = action.astype(jnp.bfloat16)
    acc1 = (jnp.dot(s, w1s, preferred_element_type=jnp.float32)
            + jnp.dot(a, w1a, preferred_element_type=jnp.float32))
    h1 = jnp.maximum(acc1 + b1, 0.0).astype(jnp.bfloat16)
    h2 = jnp.maximum(jnp.dot(h1, w2, preferred_element_type=jnp.float32) + b2, 0.0)
    return jnp.sum(h2 * w3, axis=-1, keepdims=True) + b3


def critic_reference_f32(state, action, raw_params):
    """Full-f32 reference of the PyTorch module.  The kernel uses bf16 weights
    and activations, so agreement here is only ~1e-3 relative (documented)."""
    w1, b1, w2, b2, w3, b3 = raw_params
    x = jnp.concatenate([state, action], axis=1).astype(jnp.float32)
    h1 = jnp.maximum(x @ w1 + b1, 0.0)
    h2 = jnp.maximum(h1 @ w2 + b2, 0.0)
    return h2 @ w3 + b3


if __name__ == "__main__":
    key = jax.random.PRNGKey(0)
    k_params, k_s1, k_a1, k_s2, k_a2 = jax.random.split(key, 5)

    state_size, action_size, hidden_sizes = 12, 4, (256, 256)
    raw_params = init_critic_params(k_params, state_size, action_size, hidden_sizes)
    params = prepare_critic_params(raw_params, state_size)

    # Case 1: small aligned batch (single tile).
    s1 = jax.random.normal(k_s1, (8, state_size), jnp.float32)
    a1 = jax.random.normal(k_a1, (8, action_size), jnp.float32)
    q1 = jax.block_until_ready(critic_forward(s1, a1, params))
    assert q1.shape == (8, 1), q1.shape
    assert jnp.allclose(q1, critic_reference(s1, a1, params),
                        atol=2e-3, rtol=2e-3)
    # Loose check against the true f32 network (documents bf16 weight error).
    assert jnp.allclose(q1, critic_reference_f32(s1, a1, raw_params),
                        atol=3e-2, rtol=3e-2)

    # Case 2: unaligned batch + multi-tile grid (exercises padding, >=2 grid
    # steps for dual-TC sharding, and weight residency across grid steps).
    s2 = jax.random.normal(k_s2, (20, state_size), jnp.float32)
    a2 = jax.random.normal(k_a2, (20, action_size), jnp.float32)
    q2 = jax.block_until_ready(critic_forward(s2, a2, params, tile_b=16))
    assert q2.shape == (20, 1), q2.shape
    assert jnp.allclose(q2, critic_reference(s2, a2, params),
                        atol=2e-3, rtol=2e-3)

    print("KERNEL_OK")
</pallas_src>

<mosaic_0001>
module attributes {stable_mosaic.version = 11 : i64} {
  func.func @_critic_kernel(%arg0: i32, %arg1: memref<8x12xf32, #tpu.memory_space<vmem>>, %arg2: memref<8x4xf32, #tpu.memory_space<vmem>>, %arg3: memref<12x256xbf16, #tpu.memory_space<vmem>>, %arg4: memref<4x256xbf16, #tpu.memory_space<vmem>>, %arg5: memref<1x256xf32, #tpu.memory_space<vmem>>, %arg6: memref<256x256xbf16, #tpu.memory_space<vmem>>, %arg7: memref<1x256xf32, #tpu.memory_space<vmem>>, %arg8: memref<1x256xf32, #tpu.memory_space<vmem>>, %arg9: memref<1x1xf32, #tpu.memory_space<vmem>>, %arg10: memref<8x1xf32, #tpu.memory_space<vmem>>) attributes {dimension_semantics = [#tpu.dimension_semantics<parallel>], iteration_bounds = array<i64: 1>, scalar_prefetch = 0 : i64, scratch_operands = 0 : i64, tpu.core_type = #tpu.core_type<tc>, window_params = [{transform_indices = @transform_0, window_bounds = array<i64: 8, 12>}, {transform_indices = @transform_1, window_bounds = array<i64: 8, 4>}, {pipeline_mode = #tpu.pipeline_mode<synchronous>, transform_indices = @transform_2, window_bounds = array<i64: 12, 256>}, {pipeline_mode = #tpu.pipeline_mode<synchronous>, transform_indices = @transform_3, window_bounds = array<i64: 4, 256>}, {pipeline_mode = #tpu.pipeline_mode<synchronous>, transform_indices = @transform_4, window_bounds = array<i64: 1, 256>}, {pipeline_mode = #tpu.pipeline_mode<synchronous>, transform_indices = @transform_5, window_bounds = array<i64: 256, 256>}, {pipeline_mode = #tpu.pipeline_mode<synchronous>, transform_indices = @transform_6, window_bounds = array<i64: 1, 256>}, {pipeline_mode = #tpu.pipeline_mode<synchronous>, transform_indices = @transform_7, window_bounds = array<i64: 1, 256>}, {pipeline_mode = #tpu.pipeline_mode<synchronous>, transform_indices = @transform_8, window_bounds = array<i64: 1, 1>}, {transform_indices = @transform_9, window_bounds = array<i64: 8, 1>}]} {
    %c0 = arith.constant 0 : index
    %c0_0 = arith.constant 0 : index
    %0 = vector.load %arg1[%c0, %c0_0] : memref<8x12xf32, #tpu.memory_space<vmem>>, vector<8x12xf32>
    %1 = arith.truncf %0 : vector<8x12xf32> to vector<8x12xbf16>
    %c0_1 = arith.constant 0 : index
    %c0_2 = arith.constant 0 : index
    %2 = vector.load %arg2[%c0_1, %c0_2] : memref<8x4xf32, #tpu.memory_space<vmem>>, vector<8x4xf32>
    %3 = arith.truncf %2 : vector<8x4xf32> to vector<8x4xbf16>
    %c0_3 = arith.constant 0 : index
    %c0_4 = arith.constant 0 : index
    %4 = vector.load %arg3[%c0_3, %c0_4] : memref<12x256xbf16, #tpu.memory_space<vmem>>, vector<12x256xbf16>
    %cst = arith.constant dense<0.000000e+00> : vector<8x256xf32>
    %5 = tpu.matmul %1, %4, %cst {dimension_numbers = #tpu.dot_dimension_numbers<[1], [0], [0], [1], [0, 0, 1, 1], [], []>} : vector<8x12xbf16>, vector<12x256xbf16>, vector<8x256xf32> -> vector<8x256xf32>
    %c0_5 = arith.constant 0 : index
    %c0_6 = arith.constant 0 : index
    %6 = vector.load %arg4[%c0_5, %c0_6] : memref<4x256xbf16, #tpu.memory_space<vmem>>, vector<4x256xbf16>
    %cst_7 = arith.constant dense<0.000000e+00> : vector<8x256xf32>
    %7 = tpu.matmul %3, %6, %cst_7 {dimension_numbers = #tpu.dot_dimension_numbers<[1], [0], [0], [1], [0, 0, 1, 1], [], []>} : vector<8x4xbf16>, vector<4x256xbf16>, vector<8x256xf32> -> vector<8x256xf32>
    %8 = arith.addf %5, %7 : vector<8x256xf32>
    %c0_8 = arith.constant 0 : index
    %c0_9 = arith.constant 0 : index
    %9 = vector.load %arg5[%c0_8, %c0_9] : memref<1x256xf32, #tpu.memory_space<vmem>>, vector<1x256xf32>
    %10 = vector.broadcast %9 : vector<1x256xf32> to vector<8x256xf32>
    %11 = arith.addf %8, %10 : vector<8x256xf32>
    %cst_10 = arith.constant 0.000000e+00 : f32
    %12 = vector.broadcast %cst_10 : f32 to vector<8x256xf32>
    %13 = arith.maximumf %11, %12 : vector<8x256xf32>
    %14 = arith.truncf %13 : vector<8x256xf32> to vector<8x256xbf16>
    %c0_11 = arith.constant 0 : index
    %c0_12 = arith.constant 0 : index
    %15 = vector.load %arg6[%c0_11, %c0_12] : memref<256x256xbf16, #tpu.memory_space<vmem>>, vector<256x256xbf16>
    %cst_13 = arith.constant dense<0.000000e+00> : vector<8x256xf32>
    %16 = tpu.matmul %14, %15, %cst_13 {dimension_numbers = #tpu.dot_dimension_numbers<[1], [0], [0], [1], [0, 0, 1, 1], [], []>} : vector<8x256xbf16>, vector<256x256xbf16>, vector<8x256xf32> -> vector<8x256xf32>
    %c0_14 = arith.constant 0 : index
    %c0_15 = arith.constant 0 : index
    %17 = vector.load %arg7[%c0_14, %c0_15] : memref<1x256xf32, #tpu.memory_space<vmem>>, vector<1x256xf32>
    %18 = vector.broadcast %17 : vector<1x256xf32> to vector<8x256xf32>
    %19 = arith.addf %16, %18 : vector<8x256xf32>
    %cst_16 = arith.constant 0.000000e+00 : f32
    %20 = vector.broadcast %cst_16 : f32 to vector<8x256xf32>
    %21 = arith.maximumf %19, %20 : vector<8x256xf32>
    %c0_17 = arith.constant 0 : index
    %c0_18 = arith.constant 0 : index
    %22 = vector.load %arg8[%c0_17, %c0_18] : memref<1x256xf32, #tpu.memory_space<vmem>>, vector<1x256xf32>
    %23 = vector.broadcast %22 : vector<1x256xf32> to vector<8x256xf32>
    %24 = arith.mulf %21, %23 : vector<8x256xf32>
    %cst_19 = arith.constant dense<0.000000e+00> : vector<8xf32>
    %25 = vector.multi_reduction <add>, %24, %cst_19 [1] : vector<8x256xf32> to vector<8xf32>
    %26 = vector.shape_cast %25 : vector<8xf32> to vector<8x1xf32>
    %c0_20 = arith.constant 0 : index
    %c0_21 = arith.constant 0 : index
    %27 = vector.load %arg9[%c0_20, %c0_21] : memref<1x1xf32, #tpu.memory_space<vmem>>, vector<1x1xf32>
    %28 = vector.broadcast %27 : vector<1x1xf32> to vector<8x1xf32>
    %29 = arith.addf %26, %28 : vector<8x1xf32>
    %c0_22 = arith.constant 0 : index
    %c0_23 = arith.constant 0 : index
    %30 = vector.load %arg10[%c0_22, %c0_23] : memref<8x1xf32, #tpu.memory_space<vmem>>, vector<8x1xf32>
    tpu.vector_store %arg10[%c0_22, %c0_23], %29 {strides = array<i32>} : memref<8x1xf32, #tpu.memory_space<vmem>>, vector<8x1xf32>,
    return
  }
  func.func @transform_0(%arg0: i32) -> (i32, i32) {
    %c0_i32 = arith.constant 0 : i32
    %c0_i32_0 = arith.constant 0 : i32
    return %arg0, %c0_i32 : i32, i32
  }
  func.func @transform_1(%arg0: i32) -> (i32, i32) {
    %c0_i32 = arith.constant 0 : i32
    %c0_i32_0 = arith.constant 0 : i32
    return %arg0, %c0_i32 : i32, i32
  }
  func.func @transform_2(%arg0: i32) -> (i32, i32) {
    %c0_i32 = arith.constant 0 : i32
    %c0_i32_0 = arith.constant 0 : i32
    %c0_i32_1 = arith.constant 0 : i32
    return %c0_i32, %c0_i32_0 : i32, i32
  }
  func.func @transform_3(%arg0: i32) -> (i32, i32) {
    %c0_i32 = arith.constant 0 : i32
    %c0_i32_0 = arith.constant 0 : i32
    %c0_i32_1 = arith.constant 0 : i32
    return %c0_i32, %c0_i32_0 : i32, i32
  }
  func.func @transform_4(%arg0: i32) -> (i32, i32) {
    %c0_i32 = arith.constant 0 : i32
    %c0_i32_0 = arith.constant 0 : i32
    %c0_i32_1 = arith.constant 0 : i32
    return %c0_i32, %c0_i32_0 : i32, i32
  }
  func.func @transform_5(%arg0: i32) -> (i32, i32) {
    %c0_i32 = arith.constant 0 : i32
    %c0_i32_0 = arith.constant 0 : i32
    %c0_i32_1 = arith.constant 0 : i32
    return %c0_i32, %c0_i32_0 : i32, i32
  }
  func.func @transform_6(%arg0: i32) -> (i32, i32) {
    %c0_i32 = arith.constant 0 : i32
    %c0_i32_0 = arith.constant 0 : i32
    %c0_i32_1 = arith.constant 0 : i32
    return %c0_i32, %c0_i32_0 : i32, i32
  }
  func.func @transform_7(%arg0: i32) -> (i32, i32) {
    %c0_i32 = arith.constant 0 : i32
    %c0_i32_0 = arith.constant 0 : i32
    %c0_i32_1 = arith.constant 0 : i32
    return %c0_i32, %c0_i32_0 : i32, i32
  }
  func.func @transform_8(%arg0: i32) -> (i32, i32) {
    %c0_i32 = arith.constant 0 : i32
    %c0_i32_0 = arith.constant 0 : i32
    %c0_i32_1 = arith.constant 0 : i32
    return %c0_i32, %c0_i32_0 : i32, i32
  }
  func.func @transform_9(%arg0: i32) -> (i32, i32) {
    %c0_i32 = arith.constant 0 : i32
    %c0_i32_0 = arith.constant 0 : i32
    return %arg0, %c0_i32 : i32, i32
  }
}

</mosaic_0001>

<llo_original>
// kernel: critic_forward.1
$region0: #{critic_forward.1}
  #allocation0 [shape = 'u32[]', space=smem, size = 0x4, offset = 0x4, fixed_abs, tag = 'smem constant byte address 0x4 - core index']
  #allocation1 [shape = 'u32[144,128]{1,0:T(1,128)}', space=vmem, size = 0x12000, scoped, tag = 'internal scratch']
  #allocation2 [shape = 'f32[1,1]{1,0:T(1,128)S(1)}', space=vmem, size = 0x200, scoped, tag = 'scoped memory for critic_forward.1']
  %s0 = inlined_call_operand.hbm [shape: f32[8,12], index: 0, kind: input, shape index: {}]
  %s1 = inlined_call_operand.vmem [shape: f32[8,4], index: 1, kind: input, shape index: {}]
  %s2 = inlined_call_operand.vmem [shape: bf16[12,256], index: 2, kind: input, shape index: {}]
  %s3 = inlined_call_operand.hbm [shape: bf16[4,256], index: 3, kind: input, shape index: {}]
  %s4 = inlined_call_operand.vmem [shape: f32[1,256], index: 4, kind: input, shape index: {}]
  %s5 = inlined_call_operand.hbm [shape: bf16[256,256], index: 5, kind: input, shape index: {}]
  %s6 = inlined_call_operand.vmem [shape: f32[1,256], index: 6, kind: input, shape index: {}]
  %s7 = inlined_call_operand.vmem [shape: f32[1,256], index: 7, kind: input, shape index: {}]
  %s8 = inlined_call_operand.<no memory space> [shape: f32[1,1], index: 8, kind: input, shape index: {}]
  %s9 = inlined_call_operand.vmem [shape: f32[8,1], index: 9, kind: output, shape index: {}]
  %s10 = sld [smem:[#allocation0]]
  $region58: #{critic_forward.1} parent=0
    _
  %s12 = ssub.s32 1, %s10
  %s13 = scalar_select 0, %s12, %s10
  %v14 = vstv %s8
  %15 = vst [vmem:[#allocation2] sm:$0x1] %v14
  $region1: #{critic_forward.1} parent=0
    #allocation3 [shape = 'u8[4096]{0}', space=vmem, size = 0x1000, scoped, tag = 'input window, operand 0, single buffered']
    #allocation4 [shape = 's32[1]{0}', space=sflag, size = 0x4, scoped, tag = 'scoped memory for critic_forward.1']
    #allocation5 [shape = 'u8[2048]{0}', space=vmem, size = 0x800, scoped, tag = 'input window, operand 3, single buffered']
    #allocation6 [shape = 's32[1]{0}', space=sflag, size = 0x4, scoped, tag = 'scoped memory for critic_forward.1']
    #allocation7 [shape = 'u8[131072]{0}', space=vmem, size = 0x20000, scoped, tag = 'input window, operand 5, single buffered']
    %16 = vsyncpa [#allocation4], 0
    %17 = vsyncpa [#allocation6], 0
    // Predicated region
    $region2: #{critic_forward.1} parent=1 // pred_check
      _
    $region3: #{critic_forward.1} parent=1 // pred_check_branch
      %19 = sbr.rel (0) target = $region5
    $region4: #{critic_forward.1} parent=1 // pred_region
      %s21 = ssub.s32 128, 128
      %22 = vsyncadd [#allocation4], %s21
      %s24 = sshll.u32 [#allocation3], 4
      %s25 = int_to_ptr.vmem [resolvable:$true] %s24
      %27 = dma.hbm_to_vmem [thread:$0]  %s0, 128, %s25, [#allocation4]
    $region5: #{critic_forward.1} parent=1 // pred_fallthru
      _
    // Predicated region
    $region6: #{critic_forward.1} parent=1 // pred_check
      _
    $region7: #{critic_forward.1} parent=1 // pred_check_branch
      %29 = sbr.rel (0) target = $region9
    $region8: #{critic_forward.1} parent=1 // pred_region
      _
    $region9: #{critic_forward.1} parent=1 // pred_fallthru
      _
    // Predicated region
    $region10: #{critic_forward.1} parent=1 // pred_check
      _
    $region11: #{critic_forward.1} parent=1 // pred_check_branch
      %31 = sbr.rel (0) target = $region13
    $region12: #{critic_forward.1} parent=1 // pred_region
      _
    $region13: #{critic_forward.1} parent=1 // pred_fallthru
      _
    // Predicated region
    $region14: #{critic_forward.1} parent=1 // pred_check
      _
    $region15: #{critic_forward.1} parent=1 // pred_check_branch
      %33 = sbr.rel (0) target = $region17
    $region16: #{critic_forward.1} parent=1 // pred_region
      %s35 = ssub.s32 64, 64
      %36 = vsyncadd [#allocation6], %s35
      %s38 = sshll.u32 [#allocation5], 4
      %s39 = int_to_ptr.vmem [resolvable:$true] %s38
      %41 = dma.hbm_to_vmem [thread:$0]  %s3, 64, %s39, [#allocation6]
    $region17: #{critic_forward.1} parent=1 // pred_fallthru
      _
    // Predicated region
    $region18: #{critic_forward.1} parent=1 // pred_check
      _
    $region19: #{critic_forward.1} parent=1 // pred_check_branch
      %43 = sbr.rel (0) target = $region21
    $region20: #{critic_forward.1} parent=1 // pred_region
      _
    $region21: #{critic_forward.1} parent=1 // pred_fallthru
      _
    // Predicated region
    $region22: #{critic_forward.1} parent=1 // pred_check
      _
    $region23: #{critic_forward.1} parent=1 // pred_check_branch
      %45 = sbr.rel (0) target = $region25
    $region24: #{critic_forward.1} parent=1 // pred_region
      %s47 = ssub.s32 4096, 4096
      %48 = vsyncadd [#allocation6], %s47
      %s49 = sshll.u32 [#allocation7], 4
      %s50 = int_to_ptr.vmem [resolvable:$true] %s49
      %55 = dma.hbm_to_vmem [thread:$0]  %s5, 4096, %s50, [#allocation6], 128, 128, 8
    $region25: #{critic_forward.1} parent=1 // pred_fallthru
      _
    // Predicated region
    $region26: #{critic_forward.1} parent=1 // pred_check
      _
    $region27: #{critic_forward.1} parent=1 // pred_check_branch
      %57 = sbr.rel (0) target = $region29
    $region28: #{critic_forward.1} parent=1 // pred_region
      _
    $region29: #{critic_forward.1} parent=1 // pred_fallthru
      _
    // Predicated region
    $region30: #{critic_forward.1} parent=1 // pred_check
      _
    $region31: #{critic_forward.1} parent=1 // pred_check_branch
      %59 = sbr.rel (0) target = $region33
    $region32: #{critic_forward.1} parent=1 // pred_region
      _
    $region33: #{critic_forward.1} parent=1 // pred_fallthru
      _
    // Predicated region
    $region34: #{critic_forward.1} parent=1 // pred_check
      _
    $region35: #{critic_forward.1} parent=1 // pred_check_branch
      %61 = sbr.rel (0) target = $region37
    $region36: #{critic_forward.1} parent=1 // pred_region
      _
    $region37: #{critic_forward.1} parent=1 // pred_fallthru
      _
    // Predicated region
    $region38: #{critic_forward.1} parent=1 // pred_check
      _
    $region39: #{critic_forward.1} parent=1 // pred_check_branch
      %63 = sbr.rel (0) target = $region41
    $region40: #{critic_forward.1} parent=1 // pred_region
      %64 = dma.done [#allocation4], 128
    $region41: #{critic_forward.1} parent=1 // pred_fallthru
      _
    // Predicated region
    $region42: #{critic_forward.1} parent=1 // pred_check
      _
    $region43: #{critic_forward.1} parent=1 // pred_check_branch
      %66 = sbr.rel (0) target = $region45
    $region44: #{critic_forward.1} parent=1 // pred_region
      %67 = dma.done [#allocation6], 64
    $region45: #{critic_forward.1} parent=1 // pred_fallthru
      _
    // Predicated region
    $region46: #{critic_forward.1} parent=1 // pred_check
      _
    $region47: #{critic_forward.1} parent=1 // pred_check_branch
      %69 = sbr.rel (0) target = $region49
    $region48: #{critic_forward.1} parent=1 // pred_region
      %70 = dma.done [#allocation6], 4096
    $region49: #{critic_forward.1} parent=1 // pred_fallthru
      _
    %v72 = vld [vmem:[#allocation3] sm:$0xff]
    %v73 = vpack.c.bf16 %v72, %v72
    %v74 = vld [vmem:[%s1] sm:$0xff]
    %v75 = vpack.c.bf16 %v74, %v74
    %v76 = vld [vmem:[%s2] sm:$0xff]
    %v77 = vld [vmem:[%s2 + $0x8] sm:$0x33]
    %v78 = vld [vmem:[#allocation5] sm:$0xf]
    %v81 = vunpack.c.l.s4 1983009808
    %v82 = vunpack.c.0.s8 %v81
    %v83 = vlaneseq
    %v84 = vshrl.u32 %v83, 7
    %v85 = vsub.s32 %v82, %v84
    %v86 = vrot.slane %v78, %v85
    %v87 = vcombine.high %v86, %v86
    %vm88 = vcmask 31744
    %v90 = vsel %vm88, %v75, 0
    %vm92 = vcmask 1041408
    %v94 = vsel %vm92, %v86, 0
    %v97 = vsel %vm92, %v87, 0
    %99 = vmatprep.subr.bf16.mxu0 0
    %100 = vmatpush1.bf16.msra.mxu0 0
    %101 = vmatprep.subr.bf16.mxu0 0
    %102 = vmatpush1.bf16.msra.mxu0 0
    %103 = vmatprep.subr.bf16.mxu0 0
    %104 = vmatpush1.bf16.msra.mxu0 0
    %105 = vmatprep.subr.bf16.mxu0 0
    %106 = vmatpush1.bf16.msra.mxu0 0
    %107 = vmatprep.subr.bf16.mxu0 0
    %108 = vmatpush1.bf16.msra.mxu0 0
    %109 = vmatprep.subr.bf16.mxu0 0
    %110 = vmatpush1.bf16.msra.mxu0 0
    %111 = vmatprep.subr.bf16.mxu0 0
    %112 = vmatpush1.bf16.msra.mxu0 0
    %113 = vmatprep.subr.bf16.mxu0 %v97
    %114 = vmatpush1.bf16.msra.mxu0 %v94
    %115 = vmatprep.subr.bf16.mxu0 0
    %116 = vmatpush2.bf16.msra.mxu0 0
    %117 = vmatprep.subr.bf16.mxu0 0
    %118 = vmatpush2.bf16.msra.mxu0 0
    %119 = vmatprep.subr.bf16.mxu0 0
    %120 = vmatpush2.bf16.msra.mxu0 0
    %121 = vmatprep.subr.bf16.mxu0 0
    %122 = vmatpush2.bf16.msra.mxu0 0
    %123 = vmatprep.subr.bf16.mxu0 0
    %124 = vmatpush2.bf16.msra.mxu0 0
    %125 = vmatprep.subr.bf16.mxu0 0
    %126 = vmatpush2.bf16.msra.mxu0 0
    %127 = vmatprep.subr.bf16.mxu0 0
    %128 = vmatpush2.bf16.msra.mxu0 0
    %129 = vmatprep.subr.bf16.mxu0 0
    %130 = vmatpush2.bf16.msra.mxu0 0
    %131 = vmatprep.mubr.bf16.mxu0 0
    %132 = vmatmul.mubr.bf16.gmra.mxu0 %v90
    %v133 = vpop.f32.mrf.mxu0
    %v134 = vadd.f32 0.0, %v133
    %v135 = vpop.f32.mrf.mxu0
    %v136 = vadd.f32 0.0, %v135
    %v137 = vpop.f32.mrf.mxu0
    %v138 = vpop.f32.mrf.mxu0
    %139 = vdwg.mxu0
    %v142 = vunpack.c.l.b16 %v76
    %v143 = vunpack.c.h.b16 %v76
    %v144 = vunpack.c.l.b16 %v77
    %v145 = vunpack.c.h.b16 %v77
    %v146 = vpack.c.b16 %v144, %v142
    %v147 = vpack.c.b16 %v145, %v143
    %vm148 = vcmask 97280
    %v150 = vsel %vm148, %v73, 0
    %vm152 = vcmask 1045504
    %v154 = vsel %vm152, %v146, 0
    %v157 = vsel %vm152, %v147, 0
    %159 = vmatprep.subr.bf16.mxu0 0
    %160 = vmatpush1.bf16.msra.mxu0 0
    %161 = vmatprep.subr.bf16.mxu0 0
    %162 = vmatpush1.bf16.msra.mxu0 0
    %163 = vmatprep.subr.bf16.mxu0 0
    %164 = vmatpush1.bf16.msra.mxu0 0
    %165 = vmatprep.subr.bf16.mxu0 0
    %166 = vmatpush1.bf16.msra.mxu0 0
    %167 = vmatprep.subr.bf16.mxu0 0
    %168 = vmatpush1.bf16.msra.mxu0 0
    %169 = vmatprep.subr.bf16.mxu0 0
    %170 = vmatpush1.bf16.msra.mxu0 0
    %171 = vmatprep.subr.bf16.mxu0 0
    %172 = vmatpush1.bf16.msra.mxu0 0
    %173 = vmatprep.subr.bf16.mxu0 %v157
    %174 = vmatpush1.bf16.msra.mxu0 %v154
    %175 = vmatprep.subr.bf16.mxu0 0
    %176 = vmatpush2.bf16.msra.mxu0 0
    %177 = vmatprep.subr.bf16.mxu0 0
    %178 = vmatpush2.bf16.msra.mxu0 0
    %179 = vmatprep.subr.bf16.mxu0 0
    %180 = vmatpush2.bf16.msra.mxu0 0
    %181 = vmatprep.subr.bf16.mxu0 0
    %182 = vmatpush2.bf16.msra.mxu0 0
    %183 = vmatprep.subr.bf16.mxu0 0
    %184 = vmatpush2.bf16.msra.mxu0 0
    %185 = vmatprep.subr.bf16.mxu0 0
    %186 = vmatpush2.bf16.msra.mxu0 0
    %187 = vmatprep.subr.bf16.mxu0 0
    %188 = vmatpush2.bf16.msra.mxu0 0
    %189 = vmatprep.subr.bf16.mxu0 0
    %190 = vmatpush2.bf16.msra.mxu0 0
    %191 = vmatprep.mubr.bf16.mxu0 0
    %192 = vmatmul.mubr.bf16.gmra.mxu0 %v150
    %v193 = vpop.f32.mrf.mxu0
    %v194 = vadd.f32 %v134, %v193
    %v195 = vpop.f32.mrf.mxu0
    %v196 = vadd.f32 %v136, %v195
    %v197 = vpop.f32.mrf.mxu0
    %v198 = vpop.f32.mrf.mxu0
    %199 = vdwg.mxu0
    %v200 = vld [vmem:[%s4] sm:$0x3]
    %v202 = vlaneseq
    %v203 = vshrl.u32 %v202, 7
    %v204 = vsub.s32 0, %v203
    %v205 = vrot.slane %v200, %v204
    %v206 = vlaneseq
    %v207 = vshrl.u32 %v206, 7
    %v208 = vsub.s32 1, %v207
    %v209 = vrot.slane %v200, %v208
    %v212 = vadd.f32 %v194, %v205
    %v213 = vadd.f32 %v196, %v209
    %v214 = vmax.f32 %v212, 0.0
    %v215 = vmax.f32 %v213, 0.0
    %v216 = vpack.c.bf16 %v214, %v214
    %v217 = vpack.c.bf16 %v215, %v215
    %v218 = vld [vmem:[#allocation7] sm:$0xff]
    %v219 = vld [vmem:[#allocation7 + $0x8] sm:$0xff]
    %v220 = vld [vmem:[#allocation7 + $0x10] sm:$0xff]
    %v221 = vld [vmem:[#allocation7 + $0x18] sm:$0xff]
    %v222 = vld [vmem:[#allocation7 + $0x20] sm:$0xff]
    %v223 = vld [vmem:[#allocation7 + $0x28] sm:$0xff]
    %v224 = vld [vmem:[#allocation7 + $0x30] sm:$0xff]
    %v225 = vld [vmem:[#allocation7 + $0x38] sm:$0xff]
    %v226 = vld [vmem:[#allocation7 + $0x40] sm:$0xff]
    %v227 = vld [vmem:[#allocation7 + $0x48] sm:$0xff]
    %v228 = vld [vmem:[#allocation7 + $0x50] sm:$0xff]
    %v229 = vld [vmem:[#allocation7 + $0x58] sm:$0xff]
    %v230 = vld [vmem:[#allocation7 + $0x60] sm:$0xff]
    %v231 = vld [vmem:[#allocation7 + $0x68] sm:$0xff]
    %v232 = vld [vmem:[#allocation7 + $0x70] sm:$0xff]
    %v233 = vld [vmem:[#allocation7 + $0x78] sm:$0xff]
    %v234 = vld [vmem:[#allocation7 + $0x80] sm:$0xff]
    %v235 = vld [vmem:[#allocation7 + $0x88] sm:$0xff]
    %v236 = vld [vmem:[#allocation7 + $0x90] sm:$0xff]
    %v237 = vld [vmem:[#allocation7 + $0x98] sm:$0xff]
    %v238 = vld [vmem:[#allocation7 + $0xa0] sm:$0xff]
    %v239 = vld [vmem:[#allocation7 + $0xa8] sm:$0xff]
    %v240 = vld [vmem:[#allocation7 + $0xb0] sm:$0xff]
    %v241 = vld [vmem:[#allocation7 + $0xb8] sm:$0xff]
    %v242 = vld [vmem:[#allocation7 + $0xc0] sm:$0xff]
    %v243 = vld [vmem:[#allocation7 + $0xc8] sm:$0xff]
    %v244 = vld [vmem:[#allocation7 + $0xd0] sm:$0xff]
    %v245 = vld [vmem:[#allocation7 + $0xd8] sm:$0xff]
    %v246 = vld [vmem:[#allocation7 + $0xe0] sm:$0xff]
    %v247 = vld [vmem:[#allocation7 + $0xe8] sm:$0xff]
    %v248 = vld [vmem:[#allocation7 + $0xf0] sm:$0xff]
    %v249 = vld [vmem:[#allocation7 + $0xf8] sm:$0xff]
    %v250 = vld [vmem:[%s6] sm:$0x3]
    %v252 = vlaneseq
    %v253 = vshrl.u32 %v252, 7
    %v254 = vsub.s32 0, %v253
    %v255 = vrot.slane %v250, %v254
    %v256 = vlaneseq
    %v257 = vshrl.u32 %v256, 7
    %v258 = vsub.s32 1, %v257
    %v259 = vrot.slane %v250, %v258
    %v294 = vunpack.c.l.b16 %v218
    %v295 = vunpack.c.h.b16 %v218
    %v296 = vunpack.c.l.b16 %v219
    %v297 = vunpack.c.h.b16 %v219
    %v298 = vunpack.c.l.b16 %v220
    %v299 = vunpack.c.h.b16 %v220
    %v300 = vunpack.c.l.b16 %v221
    %v301 = vunpack.c.h.b16 %v221
    %v302 = vunpack.c.l.b16 %v222
    %v303 = vunpack.c.h.b16 %v222
    %v304 = vunpack.c.l.b16 %v223
    %v305 = vunpack.c.h.b16 %v223
    %v306 = vunpack.c.l.b16 %v224
    %v307 = vunpack.c.h.b16 %v224
    %v308 = vunpack.c.l.b16 %v225
    %v309 = vunpack.c.h.b16 %v225
    %v310 = vunpack.c.l.b16 %v226
    %v311 = vunpack.c.h.b16 %v226
    %v312 = vunpack.c.l.b16 %v227
    %v313 = vunpack.c.h.b16 %v227
    %v314 = vunpack.c.l.b16 %v228
    %v315 = vunpack.c.h.b16 %v228
    %v316 = vunpack.c.l.b16 %v229
    %v317 = vunpack.c.h.b16 %v229
    %v318 = vunpack.c.l.b16 %v230
    %v319 = vunpack.c.h.b16 %v230
    %v320 = vunpack.c.l.b16 %v231
    %v321 = vunpack.c.h.b16 %v231
    %v322 = vunpack.c.l.b16 %v232
    %v323 = vunpack.c.h.b16 %v232
    %v324 = vunpack.c.l.b16 %v233
    %v325 = vunpack.c.h.b16 %v233
    %v326 = vunpack.c.l.b16 %v234
    %v327 = vunpack.c.h.b16 %v234
    %v328 = vunpack.c.l.b16 %v235
    %v329 = vunpack.c.h.b16 %v235
    %v330 = vunpack.c.l.b16 %v236
    %v331 = vunpack.c.h.b16 %v236
    %v332 = vunpack.c.l.b16 %v237
    %v333 = vunpack.c.h.b16 %v237
    %v334 = vunpack.c.l.b16 %v238
    %v335 = vunpack.c.h.b16 %v238
    %v336 = vunpack.c.l.b16 %v239
    %v337 = vunpack.c.h.b16 %v239
    %v338 = vunpack.c.l.b16 %v240
    %v339 = vunpack.c.h.b16 %v240
    %v340 = vunpack.c.l.b16 %v241
    %v341 = vunpack.c.h.b16 %v241
    %v342 = vunpack.c.l.b16 %v242
    %v343 = vunpack.c.h.b16 %v242
    %v344 = vunpack.c.l.b16 %v243
    %v345 = vunpack.c.h.b16 %v243
    %v346 = vunpack.c.l.b16 %v244
    %v347 = vunpack.c.h.b16 %v244
    %v348 = vunpack.c.l.b16 %v245
    %v349 = vunpack.c.h.b16 %v245
    %v350 = vunpack.c.l.b16 %v246
    %v351 = vunpack.c.h.b16 %v246
    %v352 = vunpack.c.l.b16 %v247
    %v353 = vunpack.c.h.b16 %v247
    %v354 = vunpack.c.l.b16 %v248
    %v355 = vunpack.c.h.b16 %v248
    %v356 = vunpack.c.l.b16 %v249
    %v357 = vunpack.c.h.b16 %v249
    %v358 = vpack.c.b16 %v296, %v294
    %v359 = vpack.c.b16 %v297, %v295
    %v360 = vpack.c.b16 %v300, %v298
    %v361 = vpack.c.b16 %v301, %v299
    %v362 = vpack.c.b16 %v304, %v302
    %v363 = vpack.c.b16 %v305, %v303
    %v364 = vpack.c.b16 %v308, %v306
    %v365 = vpack.c.b16 %v309, %v307
    %v366 = vpack.c.b16 %v312, %v310
    %v367 = vpack.c.b16 %v313, %v311
    %v368 = vpack.c.b16 %v316, %v314
    %v369 = vpack.c.b16 %v317, %v315
    %v370 = vpack.c.b16 %v320, %v318
    %v371 = vpack.c.b16 %v321, %v319
    %v372 = vpack.c.b16 %v324, %v322
    %v373 = vpack.c.b16 %v325, %v323
    %v374 = vpack.c.b16 %v328, %v326
    %v375 = vpack.c.b16 %v329, %v327
    %v376 = vpack.c.b16 %v332, %v330
    %v377 = vpack.c.b16 %v333, %v331
    %v378 = vpack.c.b16 %v336, %v334
    %v379 = vpack.c.b16 %v337, %v335
    %v380 = vpack.c.b16 %v340, %v338
    %v381 = vpack.c.b16 %v341, %v339
    %v382 = vpack.c.b16 %v344, %v342
    %v383 = vpack.c.b16 %v345, %v343
    %v384 = vpack.c.b16 %v348, %v346
    %v385 = vpack.c.b16 %v349, %v347
    %v386 = vpack.c.b16 %v352, %v350
    %v387 = vpack.c.b16 %v353, %v351
    %v388 = vpack.c.b16 %v356, %v354
    %v389 = vpack.c.b16 %v357, %v355
    %422 = vmatprep.subr.bf16.mxu0 %v373
    %423 = vmatpush1.bf16.msra.mxu0 %v372
    %424 = vmatprep.subr.bf16.mxu0 %v371
    %425 = vmatpush1.bf16.msra.mxu0 %v370
    %426 = vmatprep.subr.bf16.mxu0 %v369
    %427 = vmatpush1.bf16.msra.mxu0 %v368
    %428 = vmatprep.subr.bf16.mxu0 %v367
    %429 = vmatpush1.bf16.msra.mxu0 %v366
    %430 = vmatprep.subr.bf16.mxu0 %v365
    %431 = vmatpush1.bf16.msra.mxu0 %v364
    %432 = vmatprep.subr.bf16.mxu0 %v363
    %433 = vmatpush1.bf16.msra.mxu0 %v362
    %434 = vmatprep.subr.bf16.mxu0 %v361
    %435 = vmatpush1.bf16.msra.mxu0 %v360
    %436 = vmatprep.subr.bf16.mxu0 %v359
    %437 = vmatpush1.bf16.msra.mxu0 %v358
    %438 = vmatprep.subr.bf16.mxu0 %v389
    %439 = vmatpush2.bf16.msra.mxu0 %v388
    %440 = vmatprep.subr.bf16.mxu0 %v387
    %441 = vmatpush2.bf16.msra.mxu0 %v386
    %442 = vmatprep.subr.bf16.mxu0 %v385
    %443 = vmatpush2.bf16.msra.mxu0 %v384
    %444 = vmatprep.subr.bf16.mxu0 %v383
    %445 = vmatpush2.bf16.msra.mxu0 %v382
    %446 = vmatprep.subr.bf16.mxu0 %v381
    %447 = vmatpush2.bf16.msra.mxu0 %v380
    %448 = vmatprep.subr.bf16.mxu0 %v379
    %449 = vmatpush2.bf16.msra.mxu0 %v378
    %450 = vmatprep.subr.bf16.mxu0 %v377
    %451 = vmatpush2.bf16.msra.mxu0 %v376
    %452 = vmatprep.subr.bf16.mxu0 %v375
    %453 = vmatpush2.bf16.msra.mxu0 %v374
    %454 = vmatprep.mubr.bf16.mxu0 %v217
    %455 = vmatmul.mubr.bf16.gmra.mxu0 %v216
    %v456 = vpop.f32.mrf.mxu0
    %v457 = vadd.f32 %v255, %v456
    %v458 = vpop.f32.mrf.mxu0
    %v459 = vadd.f32 %v259, %v458
    %v460 = vpop.f32.mrf.mxu0
    %v461 = vpop.f32.mrf.mxu0
    %462 = vdwg.mxu0
    %v463 = vmax.f32 %v457, 0.0
    %v464 = vmax.f32 %v459, 0.0
    %v465 = vld [vmem:[%s7] sm:$0x3]
    %v467 = vlaneseq
    %v468 = vshrl.u32 %v467, 7
    %v469 = vsub.s32 0, %v468
    %v470 = vrot.slane %v465, %v469
    %v471 = vlaneseq
    %v472 = vshrl.u32 %v471, 7
    %v473 = vsub.s32 1, %v472
    %v474 = vrot.slane %v465, %v473
    %v477 = vmul.f32 %v463, %v470
    %v478 = vmul.f32 %v464, %v474
    %v479 = vadd.f32 %v477, %v478
    %480 = vadd.xlane.f32.xlu0 %v479
    %v481 = vpop.xlane.xlu0 %480
    %v482 = vld [vmem:[#allocation2] sm:$0x1]
    %v484 = vlaneseq
    %v485 = vshrl.u32 %v484, 7
    %v486 = vsub.s32 0, %v485
    %v487 = vrot.slane %v482, %v486
    %v489 = vadd.f32 %v481, %v487
    %vm490 = vcmask 7168
    %491 = vst.msk [vmem:[%s9] sm:$0xff] %vm490, %v489
    // Predicated region
    $region50: #{critic_forward.1} parent=1 // pred_check
      _
    $region51: #{critic_forward.1} parent=1 // pred_check_branch
      %493 = sbr.rel (0) target = $region53
    $region52: #{critic_forward.1} parent=1 // pred_region
      _
    $region53: #{critic_forward.1} parent=1 // pred_fallthru
      _
    // Predicated region
    $region54: #{critic_forward.1} parent=1 // pred_check
      _
    $region55: #{critic_forward.1} parent=1 // pred_check_branch
      %495 = sbr.rel (0) target = $region57
    $region56: #{critic_forward.1} parent=1 // pred_region
      _
    $region57: #{critic_forward.1} parent=1 // pred_fallthru
      _
    %496 = vsyncpa [#allocation4], 1
    %497 = vsyncpa [#allocation6], 1

</llo_original>
